<compile_context>
chip_gen: v7x
topology: tpu7x:2x2x1
jax: 0.10.0
libtpu: 0.0.40
codegen_flags: <defaults>
</compile_context>

<pallas_src>
import jax
import jax.numpy as jnp
from jax import lax
from jax.experimental import pallas as pl
from jax.experimental.pallas import tpu as pltpu


BLOCK_DILATION = 5   # Residual1DBlock conv dilation (hardcoded in the PyTorch module)
POOL_K = 5           # MaxPool1d kernel size
POOL_S = 2           # MaxPool1d stride
LANE = 128


def _round_up(n, m):
    return ((n + m - 1) // m) * m


def _conv_taps_matmul(h_padded, w_flat, bias, *, K, dil, Lout):
    """Dilated 'same' Conv1d as ONE fused-tap MXU matmul on a lane slab.

    h_padded: (Cin, >= Lout + dil*(K-1)) f32, already zero-padded on the lane axis
    w_flat:   (Cout, K*Cin) with w_flat[o, k*Cin + i] = weight[o, i, k]
    bias:     (Cout, 1)
    returns   (Cout, Lout) f32
    """
    wins = [h_padded[:, k * dil:k * dil + Lout] for k in range(K)]
    xk = jnp.concatenate(wins, axis=0)                          # (K*Cin, Lout)
    return jnp.dot(w_flat, xk, preferred_element_type=jnp.float32) + bias


def _pad_lr(h, left, right):
    """Zero-pad a (C, L) register slab on the lane axis (single concat, per example)."""
    c = h.shape[0]
    return jnp.concatenate(
        [jnp.zeros((c, left), jnp.float32), h, jnp.zeros((c, right), jnp.float32)],
        axis=1)


def _make_kernel(K, L0, num_blocks, lengths, L_out_pad):
    blk_total = BLOCK_DILATION * (K - 1)
    blk_left = blk_total // 2                     # PyTorch 'same': floor(total/2) left

    def kernel(x_ref, w_in_ref, b_in_ref, w_blk_ref, b_blk_ref, o_ref):
        # -- input Conv1d(D->C, K, 'same', dil=1): x pre-padded in the wrapper --------
        x = x_ref[0]                                            # (D, Lin_pad), gutters=0
        h = _conv_taps_matmul(x, w_in_ref[...], b_in_ref[...], K=K, dil=1, Lout=L0)

        # -- conv blocks (static unroll) -----------------------------------------------
        for i in range(num_blocks):
            Lc = lengths[i]
            Lo = lengths[i + 1]
            wi = w_blk_ref[i]                                   # (C, K*C), static index
            bi = b_blk_ref[i]                                   # (C, 1)

            hp = _pad_lr(h, blk_left, blk_total - blk_left)
            y1 = jnp.maximum(
                _conv_taps_matmul(hp, wi, bi, K=K, dil=BLOCK_DILATION, Lout=Lc), 0.0)
            y1p = _pad_lr(y1, blk_left, blk_total - blk_left)
            y2 = _conv_taps_matmul(y1p, wi, bi, K=K, dil=BLOCK_DILATION, Lout=Lc)
            y4 = jnp.maximum(y2 + h, 0.0)                       # residual add + relu

            # MaxPool1d(5, stride=2): stride-1 windowed max, then stride-2 selection
            # via a tiny 0/1 matrix generated in-kernel (no HBM operand).
            width = Lc - (POOL_K - 1)
            pf = y4[:, 0:width]
            for w in range(1, POOL_K):
                pf = jnp.maximum(pf, y4[:, w:w + width])
            r = lax.broadcasted_iota(jnp.int32, (width, Lo), 0)
            c = lax.broadcasted_iota(jnp.int32, (width, Lo), 1)
            sel = (r == POOL_S * c).astype(jnp.float32)
            h = jnp.dot(pf, sel, preferred_element_type=jnp.float32)   # (C, Lo)

        # -- lane-dense (128-padded) output slab ---------------------------------------
        pad = L_out_pad - lengths[-1]
        if pad:
            h = jnp.concatenate([h, jnp.zeros((h.shape[0], pad), jnp.float32)], axis=1)
        o_ref[0] = h.astype(o_ref.dtype)

    return kernel


def feature_extractor_forward(x, w_in, b_in, w_blocks, b_blocks):
    """x: (B, D, L) f32; w_in: (C, D, K); b_in: (C,);
       w_blocks/b_blocks: lists (len = num_conv_blocks) of (C, C, K) / (C,).
    Returns (B, C * L_final), matching the PyTorch module's flattened output."""
    B, D, L0 = x.shape
    C, _, K = w_in.shape
    num_blocks = len(w_blocks)

    # pooled lengths (ceil_mode=False); require Lc >= POOL_K at every block
    lengths = [L0]
    for _ in range(num_blocks):
        assert lengths[-1] >= POOL_K, f"sequence too short for MaxPool1d(5,2): {lengths}"
        lengths.append((lengths[-1] - POOL_K) // POOL_S + 1)
    L_final = lengths[-1]

    # --- wrapper-side layout plumbing (free) -------------------------------------
    in_total = K - 1                        # input conv dilation = 1
    in_left = in_total // 2
    Lin_pad = _round_up(in_left + L0 + (in_total - in_left), LANE)
    L_out_pad = _round_up(L_final, LANE)

    x_s = jnp.zeros((B, D, Lin_pad), jnp.float32)
    x_s = x_s.at[:, :, in_left:in_left + L0].set(x.astype(jnp.float32))

    w_in_f = jnp.transpose(w_in, (0, 2, 1)).reshape(C, K * D).astype(jnp.float32)
    b_in_f = b_in.reshape(C, 1).astype(jnp.float32)
    w_blk = jnp.stack(
        [jnp.transpose(w, (0, 2, 1)).reshape(C, K * C) for w in w_blocks]).astype(jnp.float32)
    b_blk = jnp.stack([b.reshape(C, 1) for b in b_blocks]).astype(jnp.float32)

    kernel = _make_kernel(K, L0, num_blocks, lengths, L_out_pad)

    # advisory cost estimate for XLA scheduling
    flops = 2 * C * (K * D) * L0 * B
    for i in range(num_blocks):
        Lc, Lo = lengths[i], lengths[i + 1]
        flops += B * (2 * (2 * C * (K * C) * Lc)                 # two block convs
                      + 2 * C * (Lc - (POOL_K - 1)) * Lo)        # in-kernel sel matmul
    operand_elems = (x_s.size + w_in_f.size + b_in_f.size + w_blk.size + b_blk.size
                     + B * C * L_out_pad)
    cost = pl.CostEstimate(flops=int(flops), transcendentals=0,
                           bytes_accessed=int(operand_elems) * 4)

    # VMEM limit sized to the per-step resident footprint (double-buffered) + headroom
    step_bytes = 4 * (D * Lin_pad + C * K * D + C
                      + num_blocks * C * (K * C + 1) + C * L_out_pad)
    vmem_limit = int(min(max(4 * step_bytes + (4 << 20), 16 << 20), 100 << 20))

    out = pl.pallas_call(
        kernel,
        out_shape=jax.ShapeDtypeStruct((B, C, L_out_pad), jnp.float32),
        grid_spec=pltpu.PrefetchScalarGridSpec(
            num_scalar_prefetch=0,
            grid=(B,),                                     # one example per grid step
            in_specs=[
                pl.BlockSpec((1, D, Lin_pad), lambda b: (b, 0, 0)),
                pl.BlockSpec((C, K * D), lambda b: (0, 0)),
                pl.BlockSpec((C, 1), lambda b: (0, 0)),
                pl.BlockSpec((num_blocks, C, K * C), lambda b: (0, 0, 0)),
                pl.BlockSpec((num_blocks, C, 1), lambda b: (0, 0, 0)),
            ],
            out_specs=pl.BlockSpec((1, C, L_out_pad), lambda b: (b, 0, 0)),
        ),
        compiler_params=pltpu.CompilerParams(
            dimension_semantics=("parallel",),             # megacore-split batches (v7x)
            vmem_limit_bytes=vmem_limit,
        ),
        cost_estimate=cost,
    )(x_s, w_in_f, b_in_f, w_blk, b_blk)

    # strip the lane pad and apply the module's x.view(bsz, -1)
    out = out[:, :, :L_final].reshape(B, C * L_final)
    return out.astype(x.dtype)


if __name__ == "__main__":
    key = jax.random.PRNGKey(0)
    # small shapes consistent with the module: data_d_steps=4, data_t_steps=32,
    # n_kernels=8, filter_size=5, num_conv_blocks=2
    B, D, L = 2, 4, 32
    C, K = 8, 5
    num_blocks = 2

    keys = jax.random.split(key, 3 + 2 * num_blocks)
    x = jax.random.normal(keys[0], (B, D, L), jnp.float32)
    w_in = jax.random.normal(keys[1], (C, D, K), jnp.float32) * 0.2
    b_in = jax.random.normal(keys[2], (C,), jnp.float32) * 0.1
    w_blocks = [jax.random.normal(keys[3 + 2 * i], (C, C, K), jnp.float32) * 0.2
                for i in range(num_blocks)]
    b_blocks = [jax.random.normal(keys[4 + 2 * i], (C,), jnp.float32) * 0.1
                for i in range(num_blocks)]

    out = feature_extractor_forward(x, w_in, b_in, w_blocks, b_blocks)
    out = jax.block_until_ready(out)

    # pure-JAX reference mirroring the PyTorch forward exactly
    def conv_same_ref(z, w, b, dil):
        k = w.shape[-1]
        total = dil * (k - 1)
        left = total // 2
        y = lax.conv_general_dilated(
            z, w, window_strides=(1,), padding=[(left, total - left)],
            rhs_dilation=(dil,), dimension_numbers=("NCH", "OIH", "NCH"))
        return y + b[None, :, None]

    h = conv_same_ref(x, w_in, b_in, 1)                              # input conv, no relu
    for i in range(num_blocks):
        y1 = jax.nn.relu(conv_same_ref(h, w_blocks[i], b_blocks[i], BLOCK_DILATION))
        y2 = conv_same_ref(y1, w_blocks[i], b_blocks[i], BLOCK_DILATION)
        y4 = jax.nn.relu(y2 + h)
        h = lax.reduce_window(y4, -jnp.inf, lax.max,
                              (1, 1, POOL_K), (1, 1, POOL_S), "VALID")
    ref = h.reshape(B, -1)

    assert out.shape == ref.shape, (out.shape, ref.shape)
    assert jnp.allclose(out, ref, atol=1e-4, rtol=1e-4), float(jnp.max(jnp.abs(out - ref)))
    print("KERNEL_OK")
</pallas_src>

<mosaic_0001>
module attributes {stable_mosaic.version = 11 : i64} {
  func.func @kernel(%arg0: i32, %arg1: memref<1x4x128xf32, #tpu.memory_space<vmem>>, %arg2: memref<8x20xf32, #tpu.memory_space<vmem>>, %arg3: memref<8x1xf32, #tpu.memory_space<vmem>>, %arg4: memref<2x8x40xf32, #tpu.memory_space<vmem>>, %arg5: memref<2x8x1xf32, #tpu.memory_space<vmem>>, %arg6: memref<1x8x128xf32, #tpu.memory_space<vmem>>) attributes {dimension_semantics = [#tpu.dimension_semantics<parallel>], iteration_bounds = array<i64: 2>, scalar_prefetch = 0 : i64, scratch_operands = 0 : i64, tpu.core_type = #tpu.core_type<tc>, window_params = [{transform_indices = @transform_0, window_bounds = array<i64: 1, 4, 128>}, {pipeline_mode = #tpu.pipeline_mode<synchronous>, transform_indices = @transform_1, window_bounds = array<i64: 8, 20>}, {pipeline_mode = #tpu.pipeline_mode<synchronous>, transform_indices = @transform_2, window_bounds = array<i64: 8, 1>}, {pipeline_mode = #tpu.pipeline_mode<synchronous>, transform_indices = @transform_3, window_bounds = array<i64: 2, 8, 40>}, {pipeline_mode = #tpu.pipeline_mode<synchronous>, transform_indices = @transform_4, window_bounds = array<i64: 2, 8, 1>}, {transform_indices = @transform_5, window_bounds = array<i64: 1, 8, 128>}]} {
    %c0 = arith.constant 0 : index
    %c0_0 = arith.constant 0 : index
    %c0_1 = arith.constant 0 : index
    %0 = vector.load %arg1[%c0, %c0_0, %c0_1] : memref<1x4x128xf32, #tpu.memory_space<vmem>>, vector<1x4x128xf32>
    %1 = vector.shape_cast %0 : vector<1x4x128xf32> to vector<4x128xf32>
    %c0_2 = arith.constant 0 : index
    %c0_3 = arith.constant 0 : index
    %2 = vector.load %arg2[%c0_2, %c0_3] : memref<8x20xf32, #tpu.memory_space<vmem>>, vector<8x20xf32>
    %c0_4 = arith.constant 0 : index
    %c0_5 = arith.constant 0 : index
    %3 = vector.load %arg3[%c0_4, %c0_5] : memref<8x1xf32, #tpu.memory_space<vmem>>, vector<8x1xf32>
    %4 = vector.extract_strided_slice %1 {offsets = [0, 0], sizes = [4, 32], strides = [1, 1]} : vector<4x128xf32> to vector<4x32xf32>
    %5 = vector.extract_strided_slice %1 {offsets = [0, 1], sizes = [4, 32], strides = [1, 1]} : vector<4x128xf32> to vector<4x32xf32>
    %6 = vector.extract_strided_slice %1 {offsets = [0, 2], sizes = [4, 32], strides = [1, 1]} : vector<4x128xf32> to vector<4x32xf32>
    %7 = vector.extract_strided_slice %1 {offsets = [0, 3], sizes = [4, 32], strides = [1, 1]} : vector<4x128xf32> to vector<4x32xf32>
    %8 = vector.extract_strided_slice %1 {offsets = [0, 4], sizes = [4, 32], strides = [1, 1]} : vector<4x128xf32> to vector<4x32xf32>
    %9 = tpu.concatenate %4, %5, %6, %7, %8 in 0 : vector<4x32xf32>, vector<4x32xf32>, vector<4x32xf32>, vector<4x32xf32>, vector<4x32xf32> -> vector<20x32xf32>
    %cst = arith.constant dense<0.000000e+00> : vector<8x32xf32>
    %10 = tpu.matmul %2, %9, %cst {dimension_numbers = #tpu.dot_dimension_numbers<[1], [0], [0], [1], [0, 0, 1, 1], [], []>} : vector<8x20xf32>, vector<20x32xf32>, vector<8x32xf32> -> vector<8x32xf32>
    %11 = vector.broadcast %3 : vector<8x1xf32> to vector<8x32xf32>
    %12 = arith.addf %10, %11 : vector<8x32xf32>
    %c0_6 = arith.constant 0 : index
    %c0_7 = arith.constant 0 : index
    %c0_8 = arith.constant 0 : index
    %13 = vector.load %arg4[%c0_6, %c0_7, %c0_8] : memref<2x8x40xf32, #tpu.memory_space<vmem>>, vector<1x8x40xf32>
    %14 = vector.shape_cast %13 : vector<1x8x40xf32> to vector<8x40xf32>
    %c0_9 = arith.constant 0 : index
    %c0_10 = arith.constant 0 : index
    %c0_11 = arith.constant 0 : index
    %15 = vector.load %arg5[%c0_9, %c0_10, %c0_11] : memref<2x8x1xf32, #tpu.memory_space<vmem>>, vector<1x8x1xf32>
    %16 = vector.shape_cast %15 : vector<1x8x1xf32> to vector<8x1xf32>
    %cst_12 = arith.constant 0.000000e+00 : f32
    %17 = vector.broadcast %cst_12 : f32 to vector<8x10xf32>
    %cst_13 = arith.constant 0.000000e+00 : f32
    %18 = vector.broadcast %cst_13 : f32 to vector<8x10xf32>
    %19 = tpu.concatenate %17, %12, %18 in 1 : vector<8x10xf32>, vector<8x32xf32>, vector<8x10xf32> -> vector<8x52xf32>
    %20 = vector.extract_strided_slice %19 {offsets = [0, 0], sizes = [8, 32], strides = [1, 1]} : vector<8x52xf32> to vector<8x32xf32>
    %21 = vector.extract_strided_slice %19 {offsets = [0, 5], sizes = [8, 32], strides = [1, 1]} : vector<8x52xf32> to vector<8x32xf32>
    %22 = vector.extract_strided_slice %19 {offsets = [0, 10], sizes = [8, 32], strides = [1, 1]} : vector<8x52xf32> to vector<8x32xf32>
    %23 = vector.extract_strided_slice %19 {offsets = [0, 15], sizes = [8, 32], strides = [1, 1]} : vector<8x52xf32> to vector<8x32xf32>
    %24 = vector.extract_strided_slice %19 {offsets = [0, 20], sizes = [8, 32], strides = [1, 1]} : vector<8x52xf32> to vector<8x32xf32>
    %25 = tpu.concatenate %20, %21, %22, %23, %24 in 0 : vector<8x32xf32>, vector<8x32xf32>, vector<8x32xf32>, vector<8x32xf32>, vector<8x32xf32> -> vector<40x32xf32>
    %cst_14 = arith.constant dense<0.000000e+00> : vector<8x32xf32>
    %26 = tpu.matmul %14, %25, %cst_14 {dimension_numbers = #tpu.dot_dimension_numbers<[1], [0], [0], [1], [0, 0, 1, 1], [], []>} : vector<8x40xf32>, vector<40x32xf32>, vector<8x32xf32> -> vector<8x32xf32>
    %27 = vector.broadcast %16 : vector<8x1xf32> to vector<8x32xf32>
    %28 = arith.addf %26, %27 : vector<8x32xf32>
    %cst_15 = arith.constant 0.000000e+00 : f32
    %29 = vector.broadcast %cst_15 : f32 to vector<8x32xf32>
    %30 = arith.maximumf %28, %29 : vector<8x32xf32>
    %cst_16 = arith.constant 0.000000e+00 : f32
    %31 = vector.broadcast %cst_16 : f32 to vector<8x10xf32>
    %cst_17 = arith.constant 0.000000e+00 : f32
    %32 = vector.broadcast %cst_17 : f32 to vector<8x10xf32>
    %33 = tpu.concatenate %31, %30, %32 in 1 : vector<8x10xf32>, vector<8x32xf32>, vector<8x10xf32> -> vector<8x52xf32>
    %34 = vector.extract_strided_slice %33 {offsets = [0, 0], sizes = [8, 32], strides = [1, 1]} : vector<8x52xf32> to vector<8x32xf32>
    %35 = vector.extract_strided_slice %33 {offsets = [0, 5], sizes = [8, 32], strides = [1, 1]} : vector<8x52xf32> to vector<8x32xf32>
    %36 = vector.extract_strided_slice %33 {offsets = [0, 10], sizes = [8, 32], strides = [1, 1]} : vector<8x52xf32> to vector<8x32xf32>
    %37 = vector.extract_strided_slice %33 {offsets = [0, 15], sizes = [8, 32], strides = [1, 1]} : vector<8x52xf32> to vector<8x32xf32>
    %38 = vector.extract_strided_slice %33 {offsets = [0, 20], sizes = [8, 32], strides = [1, 1]} : vector<8x52xf32> to vector<8x32xf32>
    %39 = tpu.concatenate %34, %35, %36, %37, %38 in 0 : vector<8x32xf32>, vector<8x32xf32>, vector<8x32xf32>, vector<8x32xf32>, vector<8x32xf32> -> vector<40x32xf32>
    %cst_18 = arith.constant dense<0.000000e+00> : vector<8x32xf32>
    %40 = tpu.matmul %14, %39, %cst_18 {dimension_numbers = #tpu.dot_dimension_numbers<[1], [0], [0], [1], [0, 0, 1, 1], [], []>} : vector<8x40xf32>, vector<40x32xf32>, vector<8x32xf32> -> vector<8x32xf32>
    %41 = vector.broadcast %16 : vector<8x1xf32> to vector<8x32xf32>
    %42 = arith.addf %40, %41 : vector<8x32xf32>
    %43 = arith.addf %42, %12 : vector<8x32xf32>
    %cst_19 = arith.constant 0.000000e+00 : f32
    %44 = vector.broadcast %cst_19 : f32 to vector<8x32xf32>
    %45 = arith.maximumf %43, %44 : vector<8x32xf32>
    %46 = vector.extract_strided_slice %45 {offsets = [0, 0], sizes = [8, 28], strides = [1, 1]} : vector<8x32xf32> to vector<8x28xf32>
    %47 = vector.extract_strided_slice %45 {offsets = [0, 1], sizes = [8, 28], strides = [1, 1]} : vector<8x32xf32> to vector<8x28xf32>
    %48 = arith.maximumf %46, %47 : vector<8x28xf32>
    %49 = vector.extract_strided_slice %45 {offsets = [0, 2], sizes = [8, 28], strides = [1, 1]} : vector<8x32xf32> to vector<8x28xf32>
    %50 = arith.maximumf %48, %49 : vector<8x28xf32>
    %51 = vector.extract_strided_slice %45 {offsets = [0, 3], sizes = [8, 28], strides = [1, 1]} : vector<8x32xf32> to vector<8x28xf32>
    %52 = arith.maximumf %50, %51 : vector<8x28xf32>
    %53 = vector.extract_strided_slice %45 {offsets = [0, 4], sizes = [8, 28], strides = [1, 1]} : vector<8x32xf32> to vector<8x28xf32>
    %54 = arith.maximumf %52, %53 : vector<8x28xf32>
    %55 = tpu.iota {dimensions = array<i32: 0>} : vector<28x14xi32>
    %56 = tpu.iota {dimensions = array<i32: 1>} : vector<28x14xi32>
    %c2_i32 = arith.constant 2 : i32
    %57 = vector.broadcast %c2_i32 : i32 to vector<28x14xi32>
    %58 = arith.muli %57, %56 : vector<28x14xi32>
    %59 = arith.cmpi eq, %55, %58 : vector<28x14xi32>
    %60 = arith.extui %59 : vector<28x14xi1> to vector<28x14xi32>
    %61 = arith.sitofp %60 : vector<28x14xi32> to vector<28x14xf32>
    %cst_20 = arith.constant dense<0.000000e+00> : vector<8x14xf32>
    %62 = tpu.matmul %54, %61, %cst_20 {dimension_numbers = #tpu.dot_dimension_numbers<[1], [0], [0], [1], [0, 0, 1, 1], [], []>} : vector<8x28xf32>, vector<28x14xf32>, vector<8x14xf32> -> vector<8x14xf32>
    %c1 = arith.constant 1 : index
    %c0_21 = arith.constant 0 : index
    %c0_22 = arith.constant 0 : index
    %63 = vector.load %arg4[%c1, %c0_21, %c0_22] : memref<2x8x40xf32, #tpu.memory_space<vmem>>, vector<1x8x40xf32>
    %64 = vector.shape_cast %63 : vector<1x8x40xf32> to vector<8x40xf32>
    %c1_23 = arith.constant 1 : index
    %c0_24 = arith.constant 0 : index
    %c0_25 = arith.constant 0 : index
    %65 = vector.load %arg5[%c1_23, %c0_24, %c0_25] : memref<2x8x1xf32, #tpu.memory_space<vmem>>, vector<1x8x1xf32>
    %66 = vector.shape_cast %65 : vector<1x8x1xf32> to vector<8x1xf32>
    %cst_26 = arith.constant 0.000000e+00 : f32
    %67 = vector.broadcast %cst_26 : f32 to vector<8x10xf32>
    %cst_27 = arith.constant 0.000000e+00 : f32
    %68 = vector.broadcast %cst_27 : f32 to vector<8x10xf32>
    %69 = tpu.concatenate %67, %62, %68 in 1 : vector<8x10xf32>, vector<8x14xf32>, vector<8x10xf32> -> vector<8x34xf32>
    %70 = vector.extract_strided_slice %69 {offsets = [0, 0], sizes = [8, 14], strides = [1, 1]} : vector<8x34xf32> to vector<8x14xf32>
    %71 = vector.extract_strided_slice %69 {offsets = [0, 5], sizes = [8, 14], strides = [1, 1]} : vector<8x34xf32> to vector<8x14xf32>
    %72 = vector.extract_strided_slice %69 {offsets = [0, 10], sizes = [8, 14], strides = [1, 1]} : vector<8x34xf32> to vector<8x14xf32>
    %73 = vector.extract_strided_slice %69 {offsets = [0, 15], sizes = [8, 14], strides = [1, 1]} : vector<8x34xf32> to vector<8x14xf32>
    %74 = vector.extract_strided_slice %69 {offsets = [0, 20], sizes = [8, 14], strides = [1, 1]} : vector<8x34xf32> to vector<8x14xf32>
    %75 = tpu.concatenate %70, %71, %72, %73, %74 in 0 : vector<8x14xf32>, vector<8x14xf32>, vector<8x14xf32>, vector<8x14xf32>, vector<8x14xf32> -> vector<40x14xf32>
    %cst_28 = arith.constant dense<0.000000e+00> : vector<8x14xf32>
    %76 = tpu.matmul %64, %75, %cst_28 {dimension_numbers = #tpu.dot_dimension_numbers<[1], [0], [0], [1], [0, 0, 1, 1], [], []>} : vector<8x40xf32>, vector<40x14xf32>, vector<8x14xf32> -> vector<8x14xf32>
    %77 = vector.broadcast %66 : vector<8x1xf32> to vector<8x14xf32>
    %78 = arith.addf %76, %77 : vector<8x14xf32>
    %cst_29 = arith.constant 0.000000e+00 : f32
    %79 = vector.broadcast %cst_29 : f32 to vector<8x14xf32>
    %80 = arith.maximumf %78, %79 : vector<8x14xf32>
    %cst_30 = arith.constant 0.000000e+00 : f32
    %81 = vector.broadcast %cst_30 : f32 to vector<8x10xf32>
    %cst_31 = arith.constant 0.000000e+00 : f32
    %82 = vector.broadcast %cst_31 : f32 to vector<8x10xf32>
    %83 = tpu.concatenate %81, %80, %82 in 1 : vector<8x10xf32>, vector<8x14xf32>, vector<8x10xf32> -> vector<8x34xf32>
    %84 = vector.extract_strided_slice %83 {offsets = [0, 0], sizes = [8, 14], strides = [1, 1]} : vector<8x34xf32> to vector<8x14xf32>
    %85 = vector.extract_strided_slice %83 {offsets = [0, 5], sizes = [8, 14], strides = [1, 1]} : vector<8x34xf32> to vector<8x14xf32>
    %86 = vector.extract_strided_slice %83 {offsets = [0, 10], sizes = [8, 14], strides = [1, 1]} : vector<8x34xf32> to vector<8x14xf32>
    %87 = vector.extract_strided_slice %83 {offsets = [0, 15], sizes = [8, 14], strides = [1, 1]} : vector<8x34xf32> to vector<8x14xf32>
    %88 = vector.extract_strided_slice %83 {offsets = [0, 20], sizes = [8, 14], strides = [1, 1]} : vector<8x34xf32> to vector<8x14xf32>
    %89 = tpu.concatenate %84, %85, %86, %87, %88 in 0 : vector<8x14xf32>, vector<8x14xf32>, vector<8x14xf32>, vector<8x14xf32>, vector<8x14xf32> -> vector<40x14xf32>
    %cst_32 = arith.constant dense<0.000000e+00> : vector<8x14xf32>
    %90 = tpu.matmul %64, %89, %cst_32 {dimension_numbers = #tpu.dot_dimension_numbers<[1], [0], [0], [1], [0, 0, 1, 1], [], []>} : vector<8x40xf32>, vector<40x14xf32>, vector<8x14xf32> -> vector<8x14xf32>
    %91 = vector.broadcast %66 : vector<8x1xf32> to vector<8x14xf32>
    %92 = arith.addf %90, %91 : vector<8x14xf32>
    %93 = arith.addf %92, %62 : vector<8x14xf32>
    %cst_33 = arith.constant 0.000000e+00 : f32
    %94 = vector.broadcast %cst_33 : f32 to vector<8x14xf32>
    %95 = arith.maximumf %93, %94 : vector<8x14xf32>
    %96 = vector.extract_strided_slice %95 {offsets = [0, 0], sizes = [8, 10], strides = [1, 1]} : vector<8x14xf32> to vector<8x10xf32>
    %97 = vector.extract_strided_slice %95 {offsets = [0, 1], sizes = [8, 10], strides = [1, 1]} : vector<8x14xf32> to vector<8x10xf32>
    %98 = arith.maximumf %96, %97 : vector<8x10xf32>
    %99 = vector.extract_strided_slice %95 {offsets = [0, 2], sizes = [8, 10], strides = [1, 1]} : vector<8x14xf32> to vector<8x10xf32>
    %100 = arith.maximumf %98, %99 : vector<8x10xf32>
    %101 = vector.extract_strided_slice %95 {offsets = [0, 3], sizes = [8, 10], strides = [1, 1]} : vector<8x14xf32> to vector<8x10xf32>
    %102 = arith.maximumf %100, %101 : vector<8x10xf32>
    %103 = vector.extract_strided_slice %95 {offsets = [0, 4], sizes = [8, 10], strides = [1, 1]} : vector<8x14xf32> to vector<8x10xf32>
    %104 = arith.maximumf %102, %103 : vector<8x10xf32>
    %105 = tpu.iota {dimensions = array<i32: 0>} : vector<10x5xi32>
    %106 = tpu.iota {dimensions = array<i32: 1>} : vector<10x5xi32>
    %c2_i32_34 = arith.constant 2 : i32
    %107 = vector.broadcast %c2_i32_34 : i32 to vector<10x5xi32>
    %108 = arith.muli %107, %106 : vector<10x5xi32>
    %109 = arith.cmpi eq, %105, %108 : vector<10x5xi32>
    %110 = arith.extui %109 : vector<10x5xi1> to vector<10x5xi32>
    %111 = arith.sitofp %110 : vector<10x5xi32> to vector<10x5xf32>
    %cst_35 = arith.constant dense<0.000000e+00> : vector<8x5xf32>
    %112 = tpu.matmul %104, %111, %cst_35 {dimension_numbers = #tpu.dot_dimension_numbers<[1], [0], [0], [1], [0, 0, 1, 1], [], []>} : vector<8x10xf32>, vector<10x5xf32>, vector<8x5xf32> -> vector<8x5xf32>
    %cst_36 = arith.constant 0.000000e+00 : f32
    %113 = vector.broadcast %cst_36 : f32 to vector<8x123xf32>
    %114 = tpu.concatenate %112, %113 in 1 : vector<8x5xf32>, vector<8x123xf32> -> vector<8x128xf32>
    %c0_37 = arith.constant 0 : index
    %c0_38 = arith.constant 0 : index
    %c0_39 = arith.constant 0 : index
    %115 = vector.load %arg6[%c0_37, %c0_38, %c0_39] : memref<1x8x128xf32, #tpu.memory_space<vmem>>, vector<1x8x128xf32>
    %116 = vector.shape_cast %115 : vector<1x8x128xf32> to vector<8x128xf32>
    %117 = vector.shape_cast %114 : vector<8x128xf32> to vector<1x8x128xf32>
    tpu.vector_store %arg6[%c0_37, %c0_38, %c0_39], %117 {strides = array<i32>} : memref<1x8x128xf32, #tpu.memory_space<vmem>>, vector<1x8x128xf32>,
    return
  }
  func.func @transform_0(%arg0: i32) -> (i32, i32, i32) {
    %c0_i32 = arith.constant 0 : i32
    %c0_i32_0 = arith.constant 0 : i32
    %c0_i32_1 = arith.constant 0 : i32
    return %arg0, %c0_i32, %c0_i32_0 : i32, i32, i32
  }
  func.func @transform_1(%arg0: i32) -> (i32, i32) {
    %c0_i32 = arith.constant 0 : i32
    %c0_i32_0 = arith.constant 0 : i32
    %c0_i32_1 = arith.constant 0 : i32
    return %c0_i32, %c0_i32_0 : i32, i32
  }
  func.func @transform_2(%arg0: i32) -> (i32, i32) {
    %c0_i32 = arith.constant 0 : i32
    %c0_i32_0 = arith.constant 0 : i32
    %c0_i32_1 = arith.constant 0 : i32
    return %c0_i32, %c0_i32_0 : i32, i32
  }
  func.func @transform_3(%arg0: i32) -> (i32, i32, i32) {
    %c0_i32 = arith.constant 0 : i32
    %c0_i32_0 = arith.constant 0 : i32
    %c0_i32_1 = arith.constant 0 : i32
    %c0_i32_2 = arith.constant 0 : i32
    return %c0_i32, %c0_i32_0, %c0_i32_1 : i32, i32, i32
  }
  func.func @transform_4(%arg0: i32) -> (i32, i32, i32) {
    %c0_i32 = arith.constant 0 : i32
    %c0_i32_0 = arith.constant 0 : i32
    %c0_i32_1 = arith.constant 0 : i32
    %c0_i32_2 = arith.constant 0 : i32
    return %c0_i32, %c0_i32_0, %c0_i32_1 : i32, i32, i32
  }
  func.func @transform_5(%arg0: i32) -> (i32, i32, i32) {
    %c0_i32 = arith.constant 0 : i32
    %c0_i32_0 = arith.constant 0 : i32
    %c0_i32_1 = arith.constant 0 : i32
    return %arg0, %c0_i32, %c0_i32_0 : i32, i32, i32
  }
}

</mosaic_0001>

<llo_original>
// kernel: tpu_custom_call.1
$region0: #{tpu_custom_call.1}
  #allocation0 [shape = 'u32[]', space=smem, size = 0x4, offset = 0x4, fixed_abs, tag = 'smem constant byte address 0x4 - core index']
  #allocation1 [shape = 'u32[144,128]{1,0:T(1,128)}', space=vmem, size = 0x12000, scoped, tag = 'internal scratch']
  %s0 = inlined_call_operand.vmem [shape: f32[2,4,128], index: 0, kind: input, shape index: {}]
  %s1 = inlined_call_operand.hbm [shape: f32[8,20], index: 1, kind: input, shape index: {}]
  %s2 = inlined_call_operand.vmem [shape: f32[8,1], index: 2, kind: input, shape index: {}]
  %s3 = inlined_call_operand.vmem [shape: f32[2,8,40], index: 3, kind: input, shape index: {}]
  %s4 = inlined_call_operand.vmem [shape: f32[2,8,1], index: 4, kind: input, shape index: {}]
  %s5 = inlined_call_operand.hbm [shape: f32[2,8,128], index: 5, kind: output, shape index: {}]
  %s6 = sld [smem:[#allocation0]]
  $region57: #{tpu_custom_call.1} parent=0
    _
  %s8 = ssub.s32 1, %s6
  %s9 = scalar_select 0, %s8, %s6
  $region1: #{tpu_custom_call.1} parent=0
    #allocation2 [shape = 'u8[4096]{0}', space=vmem, size = 0x1000, scoped, tag = 'input window, operand 1, single buffered']
    #allocation3 [shape = 's32[2]{0}', space=sflag, size = 0x8, scoped, tag = 'scoped memory for tpu_custom_call.1']
    #allocation4 [shape = 's32[2]{0}', space=sflag, size = 0x8, scoped, tag = 'scoped memory for tpu_custom_call.1']
    #allocation5 [shape = 'u8[8192]{0}', space=vmem, size = 0x2000, scoped, tag = 'output window, operand 0']
    %10 = vsyncpa [#allocation3], 0
    %11 = vsyncpa [#allocation4], 0
    %s12 = scalar_lea.sflag [#allocation4], 1
    %13 = vsyncpa %s12, 0
    loop: start=0, step=1, limit=4
    $region2: #{tpu_custom_call.1} parent=1 // loop_pre_header
      _
    $region3: #{tpu_custom_call.1} parent=1 // loop_header
      %s15 = sphi 0, %s19
      %p16 = scmp.ge.s32.totalorder %s15, 4
      %s25 = sphi 0, %s27
      %s28 = sphi 0, %s25
      %s29 = sphi 0, %s28
      %s45 = sphi 0, %s29
      %s49 = sphi 0, %s49
      %s51 = sphi 0, %s49
      %s52 = sphi 0, %s51
      %s66 = sphi 0, %s52
      %s70 = sphi 0, %s70
      %s72 = sphi 0, %s70
      %s73 = sphi 0, %s72
      %s87 = sphi 0, %s73
      %s91 = sphi 0, %s91
      %s93 = sphi 0, %s91
      %s94 = sphi 0, %s93
      %s108 = sphi 0, %s94
      %s112 = sphi 0, %s112
      %s114 = sphi 0, %s112
      %s115 = sphi 0, %s114
      %s129 = sphi 0, %s115
      %s135 = sphi 0, %s137
      %s138 = sphi 0, %s135
      %s139 = sphi 0, %s138
      %s155 = sphi 0, %s139
    $region4: #{tpu_custom_call.1} parent=1 // loop_header_branch
      %18 = sbr.rel (%p16) target = $region8
    $region5: #{tpu_custom_call.1} parent=1 // loop_body
      %s20 = ssub.s32 %s15, 1
      %s21 = ssub.s32 %s15, 2
      %s22 = sadd.s32 %s15, 1
      %s23 = ssub.s32 %s15, %s22
      %p24 = scmp.eq.s32.totalorder %s23, 0
      %s26 = sadd.s32 %s25, 1
      %s27 = scalar_select %p24, %s25, %s26
      %p30 = pneg %p24
      %p31 = scmp.eq.s32.totalorder %s15, 1
      %p32 = por %p30, %p31
      %p33 = scmp.ne.s32.totalorder %s25, %s28
      %p34 = scmp.eq.s32.totalorder %s15, 0
      %p35 = por %p33, %p34
      %p36 = scmp.ne.s32.totalorder %s25, %s28
      %p37 = scmp.eq.s32.totalorder %s20, 1
      %p38 = por %p36, %p37
      %p39 = scmp.ne.s32.totalorder %s28, %s29
      %p40 = scmp.eq.s32.totalorder %s20, 0
      %p41 = por %p39, %p40
      %p42 = scmp.ne.s32.totalorder %s28, %s29
      %p43 = scmp.eq.s32.totalorder %s21, 1
      %p44 = por %p42, %p43
      %p46 = scmp.ne.s32.totalorder %s29, %s45
      %p47 = scmp.eq.s32.totalorder %s21, 0
      %p48 = por %p46, %p47
      %s50 = sadd.s32 %s49, 1
      %p53 = scmp.eq.s32.totalorder %s15, 1
      %p54 = scmp.ne.s32.totalorder %s49, %s51
      %p55 = scmp.eq.s32.totalorder %s15, 0
      %p56 = por %p54, %p55
      %p57 = scmp.ne.s32.totalorder %s49, %s51
      %p58 = scmp.eq.s32.totalorder %s20, 1
      %p59 = por %p57, %p58
      %p60 = scmp.ne.s32.totalorder %s51, %s52
      %p61 = scmp.eq.s32.totalorder %s20, 0
      %p62 = por %p60, %p61
      %p63 = scmp.ne.s32.totalorder %s51, %s52
      %p64 = scmp.eq.s32.totalorder %s21, 1
      %p65 = por %p63, %p64
      %p67 = scmp.ne.s32.totalorder %s52, %s66
      %p68 = scmp.eq.s32.totalorder %s21, 0
      %p69 = por %p67, %p68
      %s71 = sadd.s32 %s70, 1
      %p74 = scmp.eq.s32.totalorder %s15, 1
      %p75 = scmp.ne.s32.totalorder %s70, %s72
      %p76 = scmp.eq.s32.totalorder %s15, 0
      %p77 = por %p75, %p76
      %p78 = scmp.ne.s32.totalorder %s70, %s72
      %p79 = scmp.eq.s32.totalorder %s20, 1
      %p80 = por %p78, %p79
      %p81 = scmp.ne.s32.totalorder %s72, %s73
      %p82 = scmp.eq.s32.totalorder %s20, 0
      %p83 = por %p81, %p82
      %p84 = scmp.ne.s32.totalorder %s72, %s73
      %p85 = scmp.eq.s32.totalorder %s21, 1
      %p86 = por %p84, %p85
      %p88 = scmp.ne.s32.totalorder %s73, %s87
      %p89 = scmp.eq.s32.totalorder %s21, 0
      %p90 = por %p88, %p89
      %s92 = sadd.s32 %s91, 1
      %p95 = scmp.eq.s32.totalorder %s15, 1
      %p96 = scmp.ne.s32.totalorder %s91, %s93
      %p97 = scmp.eq.s32.totalorder %s15, 0
      %p98 = por %p96, %p97
      %p99 = scmp.ne.s32.totalorder %s91, %s93
      %p100 = scmp.eq.s32.totalorder %s20, 1
      %p101 = por %p99, %p100
      %p102 = scmp.ne.s32.totalorder %s93, %s94
      %p103 = scmp.eq.s32.totalorder %s20, 0
      %p104 = por %p102, %p103
      %p105 = scmp.ne.s32.totalorder %s93, %s94
      %p106 = scmp.eq.s32.totalorder %s21, 1
      %p107 = por %p105, %p106
      %p109 = scmp.ne.s32.totalorder %s94, %s108
      %p110 = scmp.eq.s32.totalorder %s21, 0
      %p111 = por %p109, %p110
      %s113 = sadd.s32 %s112, 1
      %p116 = scmp.eq.s32.totalorder %s15, 1
      %p117 = scmp.ne.s32.totalorder %s112, %s114
      %p118 = scmp.eq.s32.totalorder %s15, 0
      %p119 = por %p117, %p118
      %p120 = scmp.ne.s32.totalorder %s112, %s114
      %p121 = scmp.eq.s32.totalorder %s20, 1
      %p122 = por %p120, %p121
      %p123 = scmp.ne.s32.totalorder %s114, %s115
      %p124 = scmp.eq.s32.totalorder %s20, 0
      %p125 = por %p123, %p124
      %p126 = scmp.ne.s32.totalorder %s114, %s115
      %p127 = scmp.eq.s32.totalorder %s21, 1
      %p128 = por %p126, %p127
      %p130 = scmp.ne.s32.totalorder %s115, %s129
      %p131 = scmp.eq.s32.totalorder %s21, 0
      %p132 = por %p130, %p131
      %s133 = ssub.s32 %s15, %s22
      %p134 = scmp.eq.s32.totalorder %s133, 0
      %s136 = sadd.s32 %s135, 1
      %s137 = scalar_select %p134, %s135, %s136
      %p140 = pneg %p134
      %p141 = scmp.eq.s32.totalorder %s15, 1
      %p142 = por %p140, %p141
      %p143 = scmp.ne.s32.totalorder %s135, %s138
      %p144 = scmp.eq.s32.totalorder %s15, 0
      %p145 = por %p143, %p144
      %p146 = scmp.ne.s32.totalorder %s135, %s138
      %p147 = scmp.eq.s32.totalorder %s20, 1
      %p148 = por %p146, %p147
      %p149 = scmp.ne.s32.totalorder %s138, %s139
      %p150 = scmp.eq.s32.totalorder %s20, 0
      %p151 = por %p149, %p150
      %p152 = scmp.ne.s32.totalorder %s138, %s139
      %p153 = scmp.eq.s32.totalorder %s21, 1
      %p154 = por %p152, %p153
      %p156 = scmp.ne.s32.totalorder %s139, %s155
      %p157 = scmp.eq.s32.totalorder %s21, 0
      %p158 = por %p156, %p157
      %p159 = scmp.le.s32.totalorder 1, %s15
      %p160 = scmp.lt.s32.totalorder %s15, 3
      %p161 = pnand %p159, %p160
      %p162 = pneg %p161
      // Predicated region
      $region9: #{tpu_custom_call.1} parent=5 // pred_check
        _
      $region10: #{tpu_custom_call.1} parent=5 // pred_check_branch
        %164 = sbr.rel (%p161) target = $region12
      $region11: #{tpu_custom_call.1} parent=5 // pred_region
        %s165 = ssub.s32 %s15, 1
        // Predicated region
        $region13: #{tpu_custom_call.1} parent=11 // pred_check
          %p166 = pneg %p62
        $region14: #{tpu_custom_call.1} parent=11 // pred_check_branch
          %168 = sbr.rel (%p166) target = $region16
        $region15: #{tpu_custom_call.1} parent=11 // pred_region
          %s170 = ssub.s32 128, 128
          %171 = vsyncadd [#allocation3], %s170
          %s173 = sshll.u32 [#allocation2], 4
          %s174 = int_to_ptr.vmem [resolvable:$true] %s173
          %176 = dma.hbm_to_vmem [thread:$0]  %s1, 128, %s174, [#allocation3]
        $region16: #{tpu_custom_call.1} parent=11 // pred_fallthru
          _
        // Predicated region
        $region17: #{tpu_custom_call.1} parent=11 // pred_check
          %p177 = pneg %p83
        $region18: #{tpu_custom_call.1} parent=11 // pred_check_branch
          %179 = sbr.rel (%p177) target = $region20
        $region19: #{tpu_custom_call.1} parent=11 // pred_region
          _
        $region20: #{tpu_custom_call.1} parent=11 // pred_fallthru
          _
        // Predicated region
        $region21: #{tpu_custom_call.1} parent=11 // pred_check
          %p180 = pneg %p104
        $region22: #{tpu_custom_call.1} parent=11 // pred_check_branch
          %182 = sbr.rel (%p180) target = $region24
        $region23: #{tpu_custom_call.1} parent=11 // pred_region
          _
        $region24: #{tpu_custom_call.1} parent=11 // pred_fallthru
          _
        // Predicated region
        $region25: #{tpu_custom_call.1} parent=11 // pred_check
          %p183 = pneg %p125
        $region26: #{tpu_custom_call.1} parent=11 // pred_check_branch
          %185 = sbr.rel (%p183) target = $region28
        $region27: #{tpu_custom_call.1} parent=11 // pred_region
          _
        $region28: #{tpu_custom_call.1} parent=11 // pred_fallthru
          _
      $region12: #{tpu_custom_call.1} parent=5 // pred_fallthru
        _
      %p186 = scmp.lt.s32.totalorder %s15, 2
      // Predicated region
      $region29: #{tpu_custom_call.1} parent=5 // pred_check
        %p187 = pneg %p186
      $region30: #{tpu_custom_call.1} parent=5 // pred_check_branch
        %189 = sbr.rel (%p187) target = $region32
      $region31: #{tpu_custom_call.1} parent=5 // pred_region
        // Predicated region
        $region33: #{tpu_custom_call.1} parent=31 // pred_check
          %p190 = pneg %p35
        $region34: #{tpu_custom_call.1} parent=31 // pred_check_branch
          %192 = sbr.rel (%p190) target = $region36
        $region35: #{tpu_custom_call.1} parent=31 // pred_region
          %p193 = scmp.lt.s32.totalorder %s15, 1
          %s194 = scalar_select %p193, %s15, 1
          %s195 = smul.addr %s194, 4
          %s196 = scalar_lea.vmem %s0, %s195
        $region36: #{tpu_custom_call.1} parent=31 // pred_fallthru
          _
      $region32: #{tpu_custom_call.1} parent=5 // pred_fallthru
        _
      %p197 = scmp.le.s32.totalorder 1, %s15
      %p198 = scmp.lt.s32.totalorder %s15, 3
      %p199 = pnand %p197, %p198
      %p200 = pneg %p199
      // Predicated region
      $region37: #{tpu_custom_call.1} parent=5 // pred_check
        _
      $region38: #{tpu_custom_call.1} parent=5 // pred_check_branch
        %202 = sbr.rel (%p199) target = $region40
      $region39: #{tpu_custom_call.1} parent=5 // pred_region
        %s203 = ssub.s32 %s15, 1
        // Predicated region
        $region41: #{tpu_custom_call.1} parent=39 // pred_check
          %p204 = pneg %p62
        $region42: #{tpu_custom_call.1} parent=39 // pred_check_branch
          %206 = sbr.rel (%p204) target = $region44
        $region43: #{tpu_custom_call.1} parent=39 // pred_region
          %207 = dma.done [#allocation3], 128
        $region44: #{tpu_custom_call.1} parent=39 // pred_fallthru
          _
        %p208 = scmp.lt.s32.totalorder %s20, 1
        %s209 = scalar_select %p208, %s20, 1
        %s210 = smul.addr %s209, 4
        %s211 = scalar_lea.vmem %s0, %s210
        %p212 = pneg %p41
        %p213 = pneg %p38
        %p214 = pneg %p62
        %p215 = pneg %p59
        %p216 = pneg %p83
        %p217 = pneg %p80
        %p218 = pneg %p104
        %p219 = pneg %p101
        %p220 = pneg %p125
        %p221 = pneg %p122
        %p222 = pneg %p151
        %p223 = pneg %p148
        %s224 = sand.u32 %s138, 1
        %s225 = scalar_lea.sflag [#allocation4], %s224
        %s226 = sand.u32 %s138, 1
        %s227 = smul.addr %s226, 8
        %s228 = scalar_lea.vmem [#allocation5], %s227
        %p229 = scmp.lt.s32.totalorder %s20, 1
        %s230 = scalar_select %p229, %s20, 1
        %s231 = smul.addr %s230, 4
        %s232 = scalar_lea.vmem %s0, %s231
        %v233 = vld [vmem:[%s232] sm:$0xf]
        %v234 = vld [vmem:[#allocation2] sm:$0xff]
        %v235 = vld [vmem:[%s2] sm:$0xff]
        %v237 = vrot.slane %v233, 4
        %238 = vrot.lane.b32.xlu0 %v237, 127
        %v239 = vpop.permute.xlu0 %238
        %241 = vrot.lane.b32.xlu0 %v233, 126
        %v242 = vpop.permute.xlu0 %241
        %244 = vrot.lane.b32.xlu0 %v237, 125
        %v245 = vpop.permute.xlu0 %244
        %247 = vrot.lane.b32.xlu0 %v233, 124
        %v248 = vpop.permute.xlu0 %247
        %vm249 = vcmask 1043456
        %v250 = vsel %vm249, %v233, %v239
        %v251 = vsel %vm249, %v242, %v245
        %253 = vset.pattern.permute.xlu0 0
        %254 = vperm.xlu0 %253, %v235
        %v255 = vpop.permute.xlu0 %254
        %vm257 = vcmask 162816
        %v259 = vsel %vm257, %v234, 0
        %v261 = vsel %vm249, %v248, 0
        %263 = vmatprep.subr.mxu0 0.0
        %264 = vmatpush1.msra.mxu0 %v250
        %265 = vmatprep.subr.mxu0 0.0
        %266 = vmatpush1.msra.mxu0 %v251
        %267 = vmatprep.subr.mxu0 0.0
        %268 = vmatpush1.msra.mxu0 %v261
        %269 = vmatprep.subr.mxu0 0.0
        %270 = vmatpush1.msra.mxu0 0.0
        %271 = vmatprep.subr.mxu0 0.0
        %272 = vmatpush1.msra.mxu0 0.0
        %273 = vmatprep.subr.mxu0 0.0
        %274 = vmatpush1.msra.mxu0 0.0
        %275 = vmatprep.subr.mxu0 0.0
        %276 = vmatpush1.msra.mxu0 0.0
        %277 = vmatprep.subr.mxu0 0.0
        %278 = vmatpush1.msra.mxu0 0.0
        %279 = vmatprep.subr.mxu0 0.0
        %280 = vmatpush1.msra.mxu0 0.0
        %281 = vmatprep.subr.mxu0 0.0
        %282 = vmatpush1.msra.mxu0 0.0
        %283 = vmatprep.subr.mxu0 0.0
        %284 = vmatpush1.msra.mxu0 0.0
        %285 = vmatprep.subr.mxu0 0.0
        %286 = vmatpush1.msra.mxu0 0.0
        %287 = vmatprep.subr.mxu0 0.0
        %288 = vmatpush1.msra.mxu0 0.0
        %289 = vmatprep.subr.mxu0 0.0
        %290 = vmatpush1.msra.mxu0 0.0
        %291 = vmatprep.subr.mxu0 0.0
        %292 = vmatpush1.msra.mxu0 0.0
        %293 = vmatprep.subr.mxu0 0.0
        %294 = vmatpush1.msra.mxu0 0.0
        %295 = vmatprep.subr.mxu0 0.0
        %296 = vmatpush1.msra.mxu0 0.0
        %297 = vmatprep.subr.mxu0 0.0
        %298 = vmatpush1.msra.mxu0 0.0
        %299 = vmatprep.subr.mxu0 0.0
        %300 = vmatpush1.msra.mxu0 0.0
        %301 = vmatprep.subr.mxu0 0.0
        %302 = vmatpush1.msra.mxu0 0.0
        %303 = vmatprep.subr.mxu0 0.0
        %304 = vmatpush1.msra.mxu0 0.0
        %305 = vmatprep.subr.mxu0 0.0
        %306 = vmatpush1.msra.mxu0 0.0
        %307 = vmatprep.subr.mxu0 0.0
        %308 = vmatpush1.msra.mxu0 0.0
        %309 = vmatprep.subr.mxu0 0.0
        %310 = vmatpush1.msra.mxu0 0.0
        %311 = vmatprep.subr.mxu0 0.0
        %312 = vmatpush1.msra.mxu0 0.0
        %313 = vmatprep.subr.mxu0 0.0
        %314 = vmatpush1.msra.mxu0 0.0
        %315 = vmatprep.subr.mxu0 0.0
        %316 = vmatpush1.msra.mxu0 0.0
        %317 = vmatprep.subr.mxu0 0.0
        %318 = vmatpush1.msra.mxu0 0.0
        %319 = vmatprep.subr.mxu0 0.0
        %320 = vmatpush1.msra.mxu0 0.0
        %321 = vmatprep.subr.mxu0 0.0
        %322 = vmatpush1.msra.mxu0 0.0
        %323 = vmatprep.subr.mxu0 0.0
        %324 = vmatpush1.msra.mxu0 0.0
        %325 = vmatprep.subr.mxu0 0.0
        %326 = vmatpush1.msra.mxu0 0.0
        %327 = vmatprep.mubr.f32.mxu0 0.0
        %328 = vmatmul.mubr.f32.gmra.mrb[0].mxu0 %v259
        %v329 = vpop.f32.mrb[0].mxu0
        %v330 = vadd.f32 %v255, %v329
        %v331 = vpop.f32.mrb[0].mxu0
        %332 = vdwg.mxu0
        %v333 = vld [vmem:[%s3] sm:$0xff]
        %v334 = vld [vmem:[%s4] sm:$0xff]
        %336 = vrot.lane.b32.xlu0 %v330, 10
        %v337 = vpop.permute.xlu0 %336
        %vm339 = vcmask 80896
        %v340 = vsel %vm339, 0.0, %v337
        %vm341 = vcmask 343040
        %v342 = vsel %vm341, %v340, 0.0
        %344 = vrot.lane.b32.xlu0 %v342, 123
        %v345 = vpop.permute.xlu0 %344
        %347 = vrot.lane.b32.xlu0 %v342, 118
        %v348 = vpop.permute.xlu0 %347
        %350 = vrot.lane.b32.xlu0 %v342, 113
        %v351 = vpop.permute.xlu0 %350
        %353 = vrot.lane.b32.xlu0 %v342, 108
        %v354 = vpop.permute.xlu0 %353
        %357 = vset.pattern.permute.xlu0 0
        %358 = vperm.xlu0 %357, %v334
        %v359 = vpop.permute.xlu0 %358
        %vm361 = vcmask 326656
        %v363 = vsel %vm361, %v333, 0
        %365 = vmatprep.subr.mxu0 0.0
        %366 = vmatpush1.msra.mxu0 %v342
        %367 = vmatprep.subr.mxu0 0.0
        %368 = vmatpush1.msra.mxu0 %v345
        %369 = vmatprep.subr.mxu0 0.0
        %370 = vmatpush1.msra.mxu0 %v348
        %371 = vmatprep.subr.mxu0 0.0
        %372 = vmatpush1.msra.mxu0 %v351
        %373 = vmatprep.subr.mxu0 0.0
        %374 = vmatpush1.msra.mxu0 %v354
        %375 = vmatprep.subr.mxu0 0.0
        %376 = vmatpush1.msra.mxu0 0.0
        %377 = vmatprep.subr.mxu0 0.0
        %378 = vmatpush1.msra.mxu0 0.0
        %379 = vmatprep.subr.mxu0 0.0
        %380 = vmatpush1.msra.mxu0 0.0
        %381 = vmatprep.subr.mxu0 0.0
        %382 = vmatpush1.msra.mxu0 0.0
        %383 = vmatprep.subr.mxu0 0.0
        %384 = vmatpush1.msra.mxu0 0.0
        %385 = vmatprep.subr.mxu0 0.0
        %386 = vmatpush1.msra.mxu0 0.0
        %387 = vmatprep.subr.mxu0 0.0
        %388 = vmatpush1.msra.mxu0 0.0
        %389 = vmatprep.subr.mxu0 0.0
        %390 = vmatpush1.msra.mxu0 0.0
        %391 = vmatprep.subr.mxu0 0.0
        %392 = vmatpush1.msra.mxu0 0.0
        %393 = vmatprep.subr.mxu0 0.0
        %394 = vmatpush1.msra.mxu0 0.0
        %395 = vmatprep.subr.mxu0 0.0
        %396 = vmatpush1.msra.mxu0 0.0
        %397 = vmatprep.subr.mxu0 0.0
        %398 = vmatpush1.msra.mxu0 0.0
        %399 = vmatprep.subr.mxu0 0.0
        %400 = vmatpush1.msra.mxu0 0.0
        %401 = vmatprep.subr.mxu0 0.0
        %402 = vmatpush1.msra.mxu0 0.0
        %403 = vmatprep.subr.mxu0 0.0
        %404 = vmatpush1.msra.mxu0 0.0
        %405 = vmatprep.subr.mxu0 0.0
        %406 = vmatpush1.msra.mxu0 0.0
        %407 = vmatprep.subr.mxu0 0.0
        %408 = vmatpush1.msra.mxu0 0.0
        %409 = vmatprep.subr.mxu0 0.0
        %410 = vmatpush1.msra.mxu0 0.0
        %411 = vmatprep.subr.mxu0 0.0
        %412 = vmatpush1.msra.mxu0 0.0
        %413 = vmatprep.subr.mxu0 0.0
        %414 = vmatpush1.msra.mxu0 0.0
        %415 = vmatprep.subr.mxu0 0.0
        %416 = vmatpush1.msra.mxu0 0.0
        %417 = vmatprep.subr.mxu0 0.0
        %418 = vmatpush1.msra.mxu0 0.0
        %419 = vmatprep.subr.mxu0 0.0
        %420 = vmatpush1.msra.mxu0 0.0
        %421 = vmatprep.subr.mxu0 0.0
        %422 = vmatpush1.msra.mxu0 0.0
        %423 = vmatprep.subr.mxu0 0.0
        %424 = vmatpush1.msra.mxu0 0.0
        %425 = vmatprep.subr.mxu0 0.0
        %426 = vmatpush1.msra.mxu0 0.0
        %427 = vmatprep.subr.mxu0 0.0
        %428 = vmatpush1.msra.mxu0 0.0
        %429 = vmatprep.mubr.f32.mxu0 0.0
        %430 = vmatmul.mubr.f32.gmra.mrb[0].mxu0 %v363
        %v431 = vpop.f32.mrb[0].mxu0
        %v432 = vadd.f32 %v359, %v431
        %v433 = vpop.f32.mrb[0].mxu0
        %434 = vdwg.mxu0
        %v435 = vmax.f32 %v432, 0.0
        %437 = vrot.lane.b32.xlu0 %v435, 10
        %v438 = vpop.permute.xlu0 %437
        %v440 = vsel %vm339, 0.0, %v438
        %v441 = vsel %vm341, %v440, 0.0
        %443 = vrot.lane.b32.xlu0 %v441, 123
        %v444 = vpop.permute.xlu0 %443
        %446 = vrot.lane.b32.xlu0 %v441, 118
        %v447 = vpop.permute.xlu0 %446
        %449 = vrot.lane.b32.xlu0 %v441, 113
        %v450 = vpop.permute.xlu0 %449
        %452 = vrot.lane.b32.xlu0 %v441, 108
        %v453 = vpop.permute.xlu0 %452
        %455 = vmatprep.subr.mxu0 0.0
        %456 = vmatpush1.msra.mxu0 %v441
        %457 = vmatprep.subr.mxu0 0.0
        %458 = vmatpush1.msra.mxu0 %v444
        %459 = vmatprep.subr.mxu0 0.0
        %460 = vmatpush1.msra.mxu0 %v447
        %461 = vmatprep.subr.mxu0 0.0
        %462 = vmatpush1.msra.mxu0 %v450
        %463 = vmatprep.subr.mxu0 0.0
        %464 = vmatpush1.msra.mxu0 %v453
        %465 = vmatprep.subr.mxu0 0.0
        %466 = vmatpush1.msra.mxu0 0.0
        %467 = vmatprep.subr.mxu0 0.0
        %468 = vmatpush1.msra.mxu0 0.0
        %469 = vmatprep.subr.mxu0 0.0
        %470 = vmatpush1.msra.mxu0 0.0
        %471 = vmatprep.subr.mxu0 0.0
        %472 = vmatpush1.msra.mxu0 0.0
        %473 = vmatprep.subr.mxu0 0.0
        %474 = vmatpush1.msra.mxu0 0.0
        %475 = vmatprep.subr.mxu0 0.0
        %476 = vmatpush1.msra.mxu0 0.0
        %477 = vmatprep.subr.mxu0 0.0
        %478 = vmatpush1.msra.mxu0 0.0
        %479 = vmatprep.subr.mxu0 0.0
        %480 = vmatpush1.msra.mxu0 0.0
        %481 = vmatprep.subr.mxu0 0.0
        %482 = vmatpush1.msra.mxu0 0.0
        %483 = vmatprep.subr.mxu0 0.0
        %484 = vmatpush1.msra.mxu0 0.0
        %485 = vmatprep.subr.mxu0 0.0
        %486 = vmatpush1.msra.mxu0 0.0
        %487 = vmatprep.subr.mxu0 0.0
        %488 = vmatpush1.msra.mxu0 0.0
        %489 = vmatprep.subr.mxu0 0.0
        %490 = vmatpush1.msra.mxu0 0.0
        %491 = vmatprep.subr.mxu0 0.0
        %492 = vmatpush1.msra.mxu0 0.0
        %493 = vmatprep.subr.mxu0 0.0
        %494 = vmatpush1.msra.mxu0 0.0
        %495 = vmatprep.subr.mxu0 0.0
        %496 = vmatpush1.msra.mxu0 0.0
        %497 = vmatprep.subr.mxu0 0.0
        %498 = vmatpush1.msra.mxu0 0.0
        %499 = vmatprep.subr.mxu0 0.0
        %500 = vmatpush1.msra.mxu0 0.0
        %501 = vmatprep.subr.mxu0 0.0
        %502 = vmatpush1.msra.mxu0 0.0
        %503 = vmatprep.subr.mxu0 0.0
        %504 = vmatpush1.msra.mxu0 0.0
        %505 = vmatprep.subr.mxu0 0.0
        %506 = vmatpush1.msra.mxu0 0.0
        %507 = vmatprep.subr.mxu0 0.0
        %508 = vmatpush1.msra.mxu0 0.0
        %509 = vmatprep.subr.mxu0 0.0
        %510 = vmatpush1.msra.mxu0 0.0
        %511 = vmatprep.subr.mxu0 0.0
        %512 = vmatpush1.msra.mxu0 0.0
        %513 = vmatprep.subr.mxu0 0.0
        %514 = vmatpush1.msra.mxu0 0.0
        %515 = vmatprep.subr.mxu0 0.0
        %516 = vmatpush1.msra.mxu0 0.0
        %517 = vmatprep.subr.mxu0 0.0
        %518 = vmatpush1.msra.mxu0 0.0
        %519 = vmatprep.mubr.f32.mxu0 0.0
        %520 = vmatmul.mubr.f32.gmra.mrb[0].mxu0 %v363
        %v521 = vpop.f32.mrb[0].mxu0
        %v522 = vadd.f32 %v359, %v521
        %v523 = vpop.f32.mrb[0].mxu0
        %524 = vdwg.mxu0
        %v525 = vadd.f32 %v522, %v330
        %v526 = vmax.f32 %v525, 0.0
        %528 = vrot.lane.b32.xlu0 %v526, 127
        %v529 = vpop.permute.xlu0 %528
        %v531 = vmax.f32 %v526, %v529
        %532 = vrot.lane.b32.xlu0 %v526, 126
        %v533 = vpop.permute.xlu0 %532
        %v535 = vmax.f32 %v531, %v533
        %536 = vrot.lane.b32.xlu0 %v526, 125
        %v537 = vpop.permute.xlu0 %536
        %v539 = vmax.f32 %v535, %v537
        %540 = vrot.lane.b32.xlu0 %v526, 124
        %v541 = vpop.permute.xlu0 %540
        %v543 = vmax.f32 %v539, %v541
        %v544 = vlaneseq
        %v545 = vshrl.u32 %v544, 7
        %v546 = vadd.s32 %v545, 8
        %v547 = vadd.s32 %v545, 16
        %v548 = vadd.s32 %v545, 24
        %v549 = vlaneseq
        %v550 = vand.u32 %v549, 127
        %v551 = vmul.u32 %v550, 2
        %vm552 = vcmp.eq.s32.totalorder %v545, %v551
        %vm553 = vcmp.eq.s32.totalorder %v546, %v551
        %vm554 = vcmp.eq.s32.totalorder %v547, %v551
        %vm555 = vcmp.eq.s32.totalorder %v548, %v551
        %v556 = vsel %vm552, 1, 0
        %v557 = vsel %vm553, 1, 0
        %v558 = vsel %vm554, 1, 0
        %v559 = vsel %vm555, 1, 0
        %v560 = vcvt.s32.f32 %v556
        %v561 = vcvt.s32.f32 %v557
        %v562 = vcvt.s32.f32 %v558
        %v563 = vcvt.s32.f32 %v559
        %vm564 = vcmask 228352
        %v566 = vsel %vm564, %v543, 0
        %v569 = vsel %vm249, %v563, 0
        %571 = vmatprep.subr.mxu0 0.0
        %572 = vmatpush1.msra.mxu0 %v560
        %573 = vmatprep.subr.mxu0 0.0
        %574 = vmatpush1.msra.mxu0 %v561
        %575 = vmatprep.subr.mxu0 0.0
        %576 = vmatpush1.msra.mxu0 %v562
        %577 = vmatprep.subr.mxu0 0.0
        %578 = vmatpush1.msra.mxu0 %v569
        %579 = vmatprep.subr.mxu0 0.0
        %580 = vmatpush1.msra.mxu0 0.0
        %581 = vmatprep.subr.mxu0 0.0
        %582 = vmatpush1.msra.mxu0 0.0
        %583 = vmatprep.subr.mxu0 0.0
        %584 = vmatpush1.msra.mxu0 0.0
        %585 = vmatprep.subr.mxu0 0.0
        %586 = vmatpush1.msra.mxu0 0.0
        %587 = vmatprep.subr.mxu0 0.0
        %588 = vmatpush1.msra.mxu0 0.0
        %589 = vmatprep.subr.mxu0 0.0
        %590 = vmatpush1.msra.mxu0 0.0
        %591 = vmatprep.subr.mxu0 0.0
        %592 = vmatpush1.msra.mxu0 0.0
        %593 = vmatprep.subr.mxu0 0.0
        %594 = vmatpush1.msra.mxu0 0.0
        %595 = vmatprep.subr.mxu0 0.0
        %596 = vmatpush1.msra.mxu0 0.0
        %597 = vmatprep.subr.mxu0 0.0
        %598 = vmatpush1.msra.mxu0 0.0
        %599 = vmatprep.subr.mxu0 0.0
        %600 = vmatpush1.msra.mxu0 0.0
        %601 = vmatprep.subr.mxu0 0.0
        %602 = vmatpush1.msra.mxu0 0.0
        %603 = vmatprep.subr.mxu0 0.0
        %604 = vmatpush1.msra.mxu0 0.0
        %605 = vmatprep.subr.mxu0 0.0
        %606 = vmatpush1.msra.mxu0 0.0
        %607 = vmatprep.subr.mxu0 0.0
        %608 = vmatpush1.msra.mxu0 0.0
        %609 = vmatprep.subr.mxu0 0.0
        %610 = vmatpush1.msra.mxu0 0.0
        %611 = vmatprep.subr.mxu0 0.0
        %612 = vmatpush1.msra.mxu0 0.0
        %613 = vmatprep.subr.mxu0 0.0
        %614 = vmatpush1.msra.mxu0 0.0
        %615 = vmatprep.subr.mxu0 0.0
        %616 = vmatpush1.msra.mxu0 0.0
        %617 = vmatprep.subr.mxu0 0.0
        %618 = vmatpush1.msra.mxu0 0.0
        %619 = vmatprep.subr.mxu0 0.0
        %620 = vmatpush1.msra.mxu0 0.0
        %621 = vmatprep.subr.mxu0 0.0
        %622 = vmatpush1.msra.mxu0 0.0
        %623 = vmatprep.subr.mxu0 0.0
        %624 = vmatpush1.msra.mxu0 0.0
        %625 = vmatprep.subr.mxu0 0.0
        %626 = vmatpush1.msra.mxu0 0.0
        %627 = vmatprep.subr.mxu0 0.0
        %628 = vmatpush1.msra.mxu0 0.0
        %629 = vmatprep.subr.mxu0 0.0
        %630 = vmatpush1.msra.mxu0 0.0
        %631 = vmatprep.subr.mxu0 0.0
        %632 = vmatpush1.msra.mxu0 0.0
        %633 = vmatprep.subr.mxu0 0.0
        %634 = vmatpush1.msra.mxu0 0.0
        %635 = vmatprep.mubr.f32.mxu0 0.0
        %636 = vmatmul.mubr.f32.gmra.mrb[0].mxu0 %v566
        %v637 = vpop.f32.mrb[0].mxu0
        %v638 = vadd.f32 0.0, %v637
        %v639 = vpop.f32.mrb[0].mxu0
        %640 = vdwg.mxu0
        %s641 = scalar_lea.vmem %s3, 8
        %v642 = vld [vmem:[%s641] sm:$0xff]
        %s643 = scalar_lea.vmem %s4, 8
        %v644 = vld [vmem:[%s643] sm:$0xff]
        %646 = vrot.lane.b32.xlu0 %v638, 10
        %v647 = vpop.permute.xlu0 %646
        %v649 = vsel %vm339, 0.0, %v647
        %vm650 = vcmask 195584
        %v651 = vsel %vm650, %v649, 0.0
        %653 = vrot.lane.b32.xlu0 %v651, 123
        %v654 = vpop.permute.xlu0 %653
        %656 = vrot.lane.b32.xlu0 %v651, 118
        %v657 = vpop.permute.xlu0 %656
        %659 = vrot.lane.b32.xlu0 %v651, 113
        %v660 = vpop.permute.xlu0 %659
        %662 = vrot.lane.b32.xlu0 %v651, 108
        %v663 = vpop.permute.xlu0 %662
        %666 = vset.pattern.permute.xlu0 0
        %667 = vperm.xlu0 %666, %v644
        %v668 = vpop.permute.xlu0 %667
        %v671 = vsel %vm361, %v642, 0
        %673 = vmatprep.subr.mxu0 0.0
        %674 = vmatpush1.msra.mxu0 %v651
        %675 = vmatprep.subr.mxu0 0.0
        %676 = vmatpush1.msra.mxu0 %v654
        %677 = vmatprep.subr.mxu0 0.0
        %678 = vmatpush1.msra.mxu0 %v657
        %679 = vmatprep.subr.mxu0 0.0
        %680 = vmatpush1.msra.mxu0 %v660
        %681 = vmatprep.subr.mxu0 0.0
        %682 = vmatpush1.msra.mxu0 %v663
        %683 = vmatprep.subr.mxu0 0.0
        %684 = vmatpush1.msra.mxu0 0.0
        %685 = vmatprep.subr.mxu0 0.0
        %686 = vmatpush1.msra.mxu0 0.0
        %687 = vmatprep.subr.mxu0 0.0
        %688 = vmatpush1.msra.mxu0 0.0
        %689 = vmatprep.subr.mxu0 0.0
        %690 = vmatpush1.msra.mxu0 0.0
        %691 = vmatprep.subr.mxu0 0.0
        %692 = vmatpush1.msra.mxu0 0.0
        %693 = vmatprep.subr.mxu0 0.0
        %694 = vmatpush1.msra.mxu0 0.0
        %695 = vmatprep.subr.mxu0 0.0
        %696 = vmatpush1.msra.mxu0 0.0
        %697 = vmatprep.subr.mxu0 0.0
        %698 = vmatpush1.msra.mxu0 0.0
        %699 = vmatprep.subr.mxu0 0.0
        %700 = vmatpush1.msra.mxu0 0.0
        %701 = vmatprep.subr.mxu0 0.0
        %702 = vmatpush1.msra.mxu0 0.0
        %703 = vmatprep.subr.mxu0 0.0
        %704 = vmatpush1.msra.mxu0 0.0
        %705 = vmatprep.subr.mxu0 0.0
        %706 = vmatpush1.msra.mxu0 0.0
        %707 = vmatprep.subr.mxu0 0.0
        %708 = vmatpush1.msra.mxu0 0.0
        %709 = vmatprep.subr.mxu0 0.0
        %710 = vmatpush1.msra.mxu0 0.0
        %711 = vmatprep.subr.mxu0 0.0
        %712 = vmatpush1.msra.mxu0 0.0
        %713 = vmatprep.subr.mxu0 0.0
        %714 = vmatpush1.msra.mxu0 0.0
        %715 = vmatprep.subr.mxu0 0.0
        %716 = vmatpush1.msra.mxu0 0.0
        %717 = vmatprep.subr.mxu0 0.0
        %718 = vmatpush1.msra.mxu0 0.0
        %719 = vmatprep.subr.mxu0 0.0
        %720 = vmatpush1.msra.mxu0 0.0
        %721 = vmatprep.subr.mxu0 0.0
        %722 = vmatpush1.msra.mxu0 0.0
        %723 = vmatprep.subr.mxu0 0.0
        %724 = vmatpush1.msra.mxu0 0.0
        %725 = vmatprep.subr.mxu0 0.0
        %726 = vmatpush1.msra.mxu0 0.0
        %727 = vmatprep.subr.mxu0 0.0
        %728 = vmatpush1.msra.mxu0 0.0
        %729 = vmatprep.subr.mxu0 0.0
        %730 = vmatpush1.msra.mxu0 0.0
        %731 = vmatprep.subr.mxu0 0.0
        %732 = vmatpush1.msra.mxu0 0.0
        %733 = vmatprep.subr.mxu0 0.0
        %734 = vmatpush1.msra.mxu0 0.0
        %735 = vmatprep.subr.mxu0 0.0
        %736 = vmatpush1.msra.mxu0 0.0
        %737 = vmatprep.mubr.f32.mxu0 0.0
        %738 = vmatmul.mubr.f32.gmra.mrb[0].mxu0 %v671
        %v739 = vpop.f32.mrb[0].mxu0
        %v740 = vadd.f32 %v668, %v739
        %v741 = vpop.f32.mrb[0].mxu0
        %742 = vdwg.mxu0
        %v743 = vmax.f32 %v740, 0.0
        %745 = vrot.lane.b32.xlu0 %v743, 10
        %v746 = vpop.permute.xlu0 %745
        %v748 = vsel %vm339, 0.0, %v746
        %v749 = vsel %vm650, %v748, 0.0
        %751 = vrot.lane.b32.xlu0 %v749, 123
        %v752 = vpop.permute.xlu0 %751
        %754 = vrot.lane.b32.xlu0 %v749, 118
        %v755 = vpop.permute.xlu0 %754
        %757 = vrot.lane.b32.xlu0 %v749, 113
        %v758 = vpop.permute.xlu0 %757
        %760 = vrot.lane.b32.xlu0 %v749, 108
        %v761 = vpop.permute.xlu0 %760
        %763 = vmatprep.subr.mxu0 0.0
        %764 = vmatpush1.msra.mxu0 %v749
        %765 = vmatprep.subr.mxu0 0.0
        %766 = vmatpush1.msra.mxu0 %v752
        %767 = vmatprep.subr.mxu0 0.0
        %768 = vmatpush1.msra.mxu0 %v755
        %769 = vmatprep.subr.mxu0 0.0
        %770 = vmatpush1.msra.mxu0 %v758
        %771 = vmatprep.subr.mxu0 0.0
        %772 = vmatpush1.msra.mxu0 %v761
        %773 = vmatprep.subr.mxu0 0.0
        %774 = vmatpush1.msra.mxu0 0.0
        %775 = vmatprep.subr.mxu0 0.0
        %776 = vmatpush1.msra.mxu0 0.0
        %777 = vmatprep.subr.mxu0 0.0
        %778 = vmatpush1.msra.mxu0 0.0
        %779 = vmatprep.subr.mxu0 0.0
        %780 = vmatpush1.msra.mxu0 0.0
        %781 = vmatprep.subr.mxu0 0.0
        %782 = vmatpush1.msra.mxu0 0.0
        %783 = vmatprep.subr.mxu0 0.0
        %784 = vmatpush1.msra.mxu0 0.0
        %785 = vmatprep.subr.mxu0 0.0
        %786 = vmatpush1.msra.mxu0 0.0
        %787 = vmatprep.subr.mxu0 0.0
        %788 = vmatpush1.msra.mxu0 0.0
        %789 = vmatprep.subr.mxu0 0.0
        %790 = vmatpush1.msra.mxu0 0.0
        %791 = vmatprep.subr.mxu0 0.0
        %792 = vmatpush1.msra.mxu0 0.0
        %793 = vmatprep.subr.mxu0 0.0
        %794 = vmatpush1.msra.mxu0 0.0
        %795 = vmatprep.subr.mxu0 0.0
        %796 = vmatpush1.msra.mxu0 0.0
        %797 = vmatprep.subr.mxu0 0.0
        %798 = vmatpush1.msra.mxu0 0.0
        %799 = vmatprep.subr.mxu0 0.0
        %800 = vmatpush1.msra.mxu0 0.0
        %801 = vmatprep.subr.mxu0 0.0
        %802 = vmatpush1.msra.mxu0 0.0
        %803 = vmatprep.subr.mxu0 0.0
        %804 = vmatpush1.msra.mxu0 0.0
        %805 = vmatprep.subr.mxu0 0.0
        %806 = vmatpush1.msra.mxu0 0.0
        %807 = vmatprep.subr.mxu0 0.0
        %808 = vmatpush1.msra.mxu0 0.0
        %809 = vmatprep.subr.mxu0 0.0
        %810 = vmatpush1.msra.mxu0 0.0
        %811 = vmatprep.subr.mxu0 0.0
        %812 = vmatpush1.msra.mxu0 0.0
        %813 = vmatprep.subr.mxu0 0.0
        %814 = vmatpush1.msra.mxu0 0.0
        %815 = vmatprep.subr.mxu0 0.0
        %816 = vmatpush1.msra.mxu0 0.0
        %817 = vmatprep.subr.mxu0 0.0
        %818 = vmatpush1.msra.mxu0 0.0
        %819 = vmatprep.subr.mxu0 0.0
        %820 = vmatpush1.msra.mxu0 0.0
        %821 = vmatprep.subr.mxu0 0.0
        %822 = vmatpush1.msra.mxu0 0.0
        %823 = vmatprep.subr.mxu0 0.0
        %824 = vmatpush1.msra.mxu0 0.0
        %825 = vmatprep.subr.mxu0 0.0
        %826 = vmatpush1.msra.mxu0 0.0
        %827 = vmatprep.mubr.f32.mxu0 0.0
        %828 = vmatmul.mubr.f32.gmra.mrb[0].mxu0 %v671
        %v829 = vpop.f32.mrb[0].mxu0
        %v830 = vadd.f32 %v668, %v829
        %v831 = vpop.f32.mrb[0].mxu0
        %832 = vdwg.mxu0
        %v833 = vadd.f32 %v830, %v638
        %v834 = vmax.f32 %v833, 0.0
        %836 = vrot.lane.b32.xlu0 %v834, 127
        %v837 = vpop.permute.xlu0 %836
        %v839 = vmax.f32 %v834, %v837
        %840 = vrot.lane.b32.xlu0 %v834, 126
        %v841 = vpop.permute.xlu0 %840
        %v843 = vmax.f32 %v839, %v841
        %844 = vrot.lane.b32.xlu0 %v834, 125
        %v845 = vpop.permute.xlu0 %844
        %v847 = vmax.f32 %v843, %v845
        %848 = vrot.lane.b32.xlu0 %v834, 124
        %v849 = vpop.permute.xlu0 %848
        %v851 = vmax.f32 %v847, %v849
        %v853 = vsel %vm339, %v851, 0
        %vm855 = vcmask 1041408
        %v857 = vsel %vm855, %v561, 0
        %859 = vmatprep.subr.mxu0 0.0
        %860 = vmatpush1.msra.mxu0 %v560
        %861 = vmatprep.subr.mxu0 0.0
        %862 = vmatpush1.msra.mxu0 %v857
        %863 = vmatprep.subr.mxu0 0.0
        %864 = vmatpush1.msra.mxu0 0.0
        %865 = vmatprep.subr.mxu0 0.0
        %866 = vmatpush1.msra.mxu0 0.0
        %867 = vmatprep.subr.mxu0 0.0
        %868 = vmatpush1.msra.mxu0 0.0
        %869 = vmatprep.subr.mxu0 0.0
        %870 = vmatpush1.msra.mxu0 0.0
        %871 = vmatprep.subr.mxu0 0.0
        %872 = vmatpush1.msra.mxu0 0.0
        %873 = vmatprep.subr.mxu0 0.0
        %874 = vmatpush1.msra.mxu0 0.0
        %875 = vmatprep.subr.mxu0 0.0
        %876 = vmatpush1.msra.mxu0 0.0
        %877 = vmatprep.subr.mxu0 0.0
        %878 = vmatpush1.msra.mxu0 0.0
        %879 = vmatprep.subr.mxu0 0.0
        %880 = vmatpush1.msra.mxu0 0.0
        %881 = vmatprep.subr.mxu0 0.0
        %882 = vmatpush1.msra.mxu0 0.0
        %883 = vmatprep.subr.mxu0 0.0
        %884 = vmatpush1.msra.mxu0 0.0
        %885 = vmatprep.subr.mxu0 0.0
        %886 = vmatpush1.msra.mxu0 0.0
        %887 = vmatprep.subr.mxu0 0.0
        %888 = vmatpush1.msra.mxu0 0.0
        %889 = vmatprep.subr.mxu0 0.0
        %890 = vmatpush1.msra.mxu0 0.0
        %891 = vmatprep.subr.mxu0 0.0
        %892 = vmatpush1.msra.mxu0 0.0
        %893 = vmatprep.subr.mxu0 0.0
        %894 = vmatpush1.msra.mxu0 0.0
        %895 = vmatprep.subr.mxu0 0.0
        %896 = vmatpush1.msra.mxu0 0.0
        %897 = vmatprep.subr.mxu0 0.0
        %898 = vmatpush1.msra.mxu0 0.0
        %899 = vmatprep.subr.mxu0 0.0
        %900 = vmatpush1.msra.mxu0 0.0
        %901 = vmatprep.subr.mxu0 0.0
        %902 = vmatpush1.msra.mxu0 0.0
        %903 = vmatprep.subr.mxu0 0.0
        %904 = vmatpush1.msra.mxu0 0.0
        %905 = vmatprep.subr.mxu0 0.0
        %906 = vmatpush1.msra.mxu0 0.0
        %907 = vmatprep.subr.mxu0 0.0
        %908 = vmatpush1.msra.mxu0 0.0
        %909 = vmatprep.subr.mxu0 0.0
        %910 = vmatpush1.msra.mxu0 0.0
        %911 = vmatprep.subr.mxu0 0.0
        %912 = vmatpush1.msra.mxu0 0.0
        %913 = vmatprep.subr.mxu0 0.0
        %914 = vmatpush1.msra.mxu0 0.0
        %915 = vmatprep.subr.mxu0 0.0
        %916 = vmatpush1.msra.mxu0 0.0
        %917 = vmatprep.subr.mxu0 0.0
        %918 = vmatpush1.msra.mxu0 0.0
        %919 = vmatprep.subr.mxu0 0.0
        %920 = vmatpush1.msra.mxu0 0.0
        %921 = vmatprep.subr.mxu0 0.0
        %922 = vmatpush1.msra.mxu0 0.0
        %923 = vmatprep.mubr.f32.mxu0 0.0
        %924 = vmatmul.mubr.f32.gmra.mrb[0].mxu0 %v853
        %v925 = vpop.f32.mrb[0].mxu0
        %v926 = vadd.f32 0.0, %v925
        %v927 = vpop.f32.mrb[0].mxu0
        %928 = vdwg.mxu0
        %vm929 = vcmask 39936
        %v930 = vsel %vm929, %v926, 0.0
        %931 = vst [vmem:[%s228] sm:$0xff] %v930
        %s932 = sand.u32 %s138, 1
        %s933 = scalar_lea.sflag [#allocation4], %s932
        %s934 = sand.u32 %s138, 1
        %s935 = smul.addr %s934, 8
        %s936 = scalar_lea.vmem [#allocation5], %s935
        // Predicated region
        $region45: #{tpu_custom_call.1} parent=39 // pred_check
          %p937 = pneg %p148
        $region46: #{tpu_custom_call.1} parent=39 // pred_check_branch
          %939 = sbr.rel (%p937) target = $region48
        $region47: #{tpu_custom_call.1} parent=39 // pred_region
          %s941 = ssub.s32 128, 128
          %942 = vsyncadd %s933, %s941
          %s943 = smul.addr %s20, 128
          %s944 = scalar_lea.hbm %s5, %s943
          %s946 = sshll.u32 %s936, 4
          %s947 = int_to_ptr.vmem [resolvable:$true] %s946
          %949 = dma.vmem_to_hbm [thread:$0]  %s947, 128, %s944, %s933
        $region48: #{tpu_custom_call.1} parent=39 // pred_fallthru
          _
      $region40: #{tpu_custom_call.1} parent=5 // pred_fallthru
        _
      %p950 = scmp.le.s32.totalorder 2, %s15
      // Predicated region
      $region49: #{tpu_custom_call.1} parent=5 // pred_check
        %p951 = pneg %p950
      $region50: #{tpu_custom_call.1} parent=5 // pred_check_branch
        %953 = sbr.rel (%p951) target = $region52
      $region51: #{tpu_custom_call.1} parent=5 // pred_region
        %s954 = ssub.s32 %s15, 2
        // Predicated region
        $region53: #{tpu_custom_call.1} parent=51 // pred_check
          %p955 = pneg %p154
        $region54: #{tpu_custom_call.1} parent=51 // pred_check_branch
          %957 = sbr.rel (%p955) target = $region56
        $region55: #{tpu_custom_call.1} parent=51 // pred_region
          %s958 = sand.u32 %s139, 1
          %s959 = scalar_lea.sflag [#allocation4], %s958
          %s960 = sand.u32 %s139, 1
          %s961 = smul.addr %s960, 8
          %s962 = scalar_lea.vmem [#allocation5], %s961
          %963 = dma.done %s959, 128
        $region56: #{tpu_custom_call.1} parent=51 // pred_fallthru
          _
      $region52: #{tpu_custom_call.1} parent=5 // pred_fallthru
        _
    $region6: #{tpu_custom_call.1} parent=1 // loop_footer
      %s19 = sadd.s32 1, %s15
    $region7: #{tpu_custom_call.1} parent=1 // loop_footer_branch
      %14 = sbr.rel target = $region3
    $region8: #{tpu_custom_call.1} parent=1 // loop_exit
      _
    %964 = vsyncpa [#allocation3], 1
    %s965 = scalar_lea.sflag [#allocation3], 1
    %966 = vsyncpa %s965, 1
    %967 = vsyncpa [#allocation4], 1
    %s968 = scalar_lea.sflag [#allocation4], 1
    %969 = vsyncpa %s968, 1

</llo_original>
